<compile_context>
chip_gen: v7x
topology: tpu7x:2x2x1
jax: 0.10.0
libtpu: 0.0.40
codegen_flags: <defaults>
</compile_context>

<pallas_src>
import functools

import jax
import jax.numpy as jnp
from jax.experimental import pallas as pl
from jax.experimental.pallas import tpu as pltpu

EPS = 1e-5
LANE = 128


def _round_up(x, m):
    return (x + m - 1) // m * m


def _vmem_limit_bytes():
    cap = 64 * 1024 * 1024  # safe fallback = v7x physical VMEM per TensorCore
    try:
        cap = int(getattr(pltpu.get_tpu_info(), "vmem_capacity_bytes", cap)) or cap
    except Exception:
        pass
    # leave headroom for compiler scratch; ~48 MiB on v7x, ~96-110 MiB on v5e/v6e.
    return max(32 * 1024 * 1024, min((cap * 3) // 4, 110 * 1024 * 1024))


# --------------------------------------------------------------------------- #
# Pass 1: 3 row-tap matmuls (K = 3*Cin) over M = B*OH*OW rows, VMEM f32        #
# accumulator, bf16 y store + per-grid-step partial channel sum / sum-of-sq.   #
# --------------------------------------------------------------------------- #
def _conv_stats_kernel(v0, v1, w_ref, y_ref, psum_ref, psumsq_ref, acc_ref, *,
                       ow, ohw, b_img):
    views = (v0, v1)                      # parity views: (B, (OH+1)*OW, 3*Cin) bf16
    bm, cp = acc_ref.shape                # bm = B*OH*OW
    k3 = w_ref.shape[1]

    # Three accumulated tap matmuls (ki = kernel row); column taps live in K.
    for ki in range(3):
        rp, dy = ki % 2, ki // 2
        # static, sublane-resident slice; ohw is a multiple of 8 so the collapse
        # of (B, ohw) -> (B*ohw,) is a pure relabel.
        xt = views[rp][:, dy * ow: dy * ow + ohw, :].reshape(bm, k3)
        contrib = jnp.dot(xt, w_ref[ki], preferred_element_type=jnp.float32)
        if ki == 0:
            acc_ref[...] = contrib
        else:
            acc_ref[...] += contrib

    # Finalize per image (bounds vreg pressure): bf16 y store + f32 partial stats.
    psum = jnp.zeros((1, cp), jnp.float32)
    psumsq = jnp.zeros((1, cp), jnp.float32)
    for b in range(b_img):
        a = acc_ref[b * ohw:(b + 1) * ohw, :]
        y_ref[b * ohw:(b + 1) * ohw, :] = a.astype(y_ref.dtype)
        psum = psum + jnp.sum(a, axis=0, keepdims=True)
        psumsq = psumsq + jnp.sum(a * a, axis=0, keepdims=True)

    # Per-step partial stats, broadcast over 8 sublanes (keeps the output block
    # (8, CP)-aligned); the reducer divides by 8.  Grid axis stays 'parallel'.
    psum_ref[...] = jnp.broadcast_to(psum, (8, cp))
    psumsq_ref[...] = jnp.broadcast_to(psumsq, (8, cp))


# --------------------------------------------------------------------------- #
# Pass 1.5: reduce partial stats, precompute BN scale/shift once.               #
# --------------------------------------------------------------------------- #
def _scale_shift_kernel(psum_ref, psumsq_ref, gamma_ref, beta_ref,
                        scale_ref, shift_ref, *, m_total):
    inv_m = 1.0 / float(m_total)
    s = jnp.sum(psum_ref[...], axis=0, keepdims=True) * 0.125
    ss = jnp.sum(psumsq_ref[...], axis=0, keepdims=True) * 0.125
    mean = s * inv_m
    # E[x^2]-E[x]^2 in f32 with a clamp; partial sums are per-step f32 so the
    # cancellation risk is modest for real activations.
    var = jnp.maximum(ss * inv_m - mean * mean, 0.0)
    scale = gamma_ref[...] * jax.lax.rsqrt(var + EPS)     # rsqrt -> EUP
    scale_ref[...] = scale
    shift_ref[...] = beta_ref[...] - mean * scale


# --------------------------------------------------------------------------- #
# Pass 2: fused scale/shift + ReLU over lane-dense (TM, CP) row tiles.          #
# --------------------------------------------------------------------------- #
def _bn_act_kernel(scale_ref, shift_ref, y_ref, o_ref, *, neg_slope):
    z = y_ref[...].astype(jnp.float32) * scale_ref[...] + shift_ref[...]
    if neg_slope == 0.0:
        o_ref[...] = jnp.maximum(z, 0.0)
    else:
        o_ref[...] = jnp.where(z >= 0.0, z, neg_slope * z)


# --------------------------------------------------------------------------- #
# Channels-last (native) wrapper.                                              #
# --------------------------------------------------------------------------- #
def conv_bn_act_downsample_nhwc(x_nhwc, w_oihw, gamma, beta, *,
                                neg_slope=0.0, compute_dtype=jnp.bfloat16):
    """Conv2d(3x3, s=2, p=1, bias=False) -> BatchNorm2d (batch stats) -> ReLU."""
    n, h, w, cin = x_nhwc.shape
    cout, cin_w, kh, kw = w_oihw.shape
    assert cin_w == cin and (kh, kw) == (3, 3)
    assert h % 2 == 0 and w % 2 == 0
    oh, ow = h // 2, w // 2
    ohw = oh * ow                      # multiple of 8 for all CIFAR ResNet layers
    cp = _round_up(cout, LANE)         # lane-dense output channels
    rows = (oh + 1) * ow
    k3 = 3 * cin
    m = n * ohw                        # true BN sample count

    # Images per grid step: amortise grid overhead & fill MXU M; cap acc scratch ~4MB.
    b_img = max(1, min(8, n, (4 * 1024 * 1024) // (ohw * cp * 4)))
    n_pad = -(-n // b_img) * b_img     # zero-padded images contribute exactly 0 to
    g = n_pad // b_img                 # the (bias-free) conv and hence to the stats
    m_pad = n_pad * ohw
    bm = b_img * ohw

    # ---- layout prep (XLA, once per call; a full model would keep NHWC + reuse) ----
    xp = jnp.pad(x_nhwc, ((0, n_pad - n), (1, 1), (1, 1), (0, 0))).astype(compute_dtype)
    # 2 parity views with the 3 column taps stacked into channels: (n_pad, rows, 3*Cin)
    views = []
    for rp in (0, 1):
        xr = xp[:, rp::2, :, :]                                     # (n_pad, OH+1, W+2, Cin)
        taps = [xr[:, :, kj:kj + 2 * ow:2, :] for kj in range(3)]   # each (n_pad, OH+1, OW, Cin)
        views.append(jnp.stack(taps, axis=3).reshape(n_pad, rows, k3))

    # (Cout, Cin, 3, 3) -> (ki, kj, Cin, Cout) -> (3, 3*Cin, CP) lane-padded bf16.
    w_taps = jnp.transpose(w_oihw, (2, 3, 1, 0)).reshape(3, k3, cout)
    w_taps = jnp.pad(w_taps, ((0, 0), (0, 0), (0, cp - cout))).astype(compute_dtype)

    gamma_p = jnp.pad(gamma.astype(jnp.float32), (0, cp - cout),
                      constant_values=1.0).reshape(1, cp)
    beta_p = jnp.pad(beta.astype(jnp.float32), (0, cp - cout)).reshape(1, cp)

    vmem_lim = _vmem_limit_bytes()
    view_spec = pl.BlockSpec((b_img, rows, k3), lambda i: (i, 0, 0))
    vec_spec = pl.BlockSpec((1, cp), lambda i: (0, 0))

    # ---- pass 1: conv + per-step partial stats ('parallel' -> megacore on v7x) ----
    y, psum, psumsq = pl.pallas_call(
        functools.partial(_conv_stats_kernel, ow=ow, ohw=ohw, b_img=b_img),
        grid=(g,),
        in_specs=[view_spec, view_spec,
                  pl.BlockSpec((3, k3, cp), lambda i: (0, 0, 0))],
        out_specs=(
            pl.BlockSpec((bm, cp), lambda i: (i, 0)),
            pl.BlockSpec((8, cp), lambda i: (i, 0)),
            pl.BlockSpec((8, cp), lambda i: (i, 0)),
        ),
        out_shape=(
            jax.ShapeDtypeStruct((m_pad, cp), jnp.bfloat16),
            jax.ShapeDtypeStruct((8 * g, cp), jnp.float32),
            jax.ShapeDtypeStruct((8 * g, cp), jnp.float32),
        ),
        scratch_shapes=[pltpu.VMEM((bm, cp), jnp.float32)],
        compiler_params=pltpu.CompilerParams(
            dimension_semantics=("parallel",),
            vmem_limit_bytes=vmem_lim,
        ),
        cost_estimate=pl.CostEstimate(
            flops=int(2 * m_pad * cp * 9 * cin),
            transcendentals=0,
            bytes_accessed=int(2 * n_pad * rows * k3 * 2 + 3 * k3 * cp * 2
                               + m_pad * cp * 2 + 2 * 8 * g * cp * 4),
        ),
    )(views[0], views[1], w_taps)

    # ---- pass 1.5: reduce partials -> BN scale/shift (tiny, single step) ----
    scale, shift = pl.pallas_call(
        functools.partial(_scale_shift_kernel, m_total=m),
        grid=(1,),
        in_specs=[pl.BlockSpec((8 * g, cp), lambda i: (0, 0)),
                  pl.BlockSpec((8 * g, cp), lambda i: (0, 0)),
                  vec_spec, vec_spec],
        out_specs=(vec_spec, vec_spec),
        out_shape=(jax.ShapeDtypeStruct((1, cp), jnp.float32),
                   jax.ShapeDtypeStruct((1, cp), jnp.float32)),
        compiler_params=pltpu.CompilerParams(dimension_semantics=("arbitrary",)),
    )(psum, psumsq, gamma_p, beta_p)

    # ---- pass 2: scale/shift + ReLU over fixed lane-dense row tiles ----
    tm = min(1024, m_pad)
    out_flat = pl.pallas_call(
        functools.partial(_bn_act_kernel, neg_slope=neg_slope),
        grid=(pl.cdiv(m_pad, tm),),
        in_specs=[vec_spec, vec_spec,
                  pl.BlockSpec((tm, cp), lambda i: (i, 0))],
        out_specs=pl.BlockSpec((tm, cp), lambda i: (i, 0)),
        out_shape=jax.ShapeDtypeStruct((m_pad, cp), jnp.float32),
        compiler_params=pltpu.CompilerParams(
            dimension_semantics=("parallel",),
            vmem_limit_bytes=vmem_lim,
        ),
        cost_estimate=pl.CostEstimate(
            flops=int(4 * m_pad * cp),
            transcendentals=0,
            bytes_accessed=int(m_pad * cp * 2 + m_pad * cp * 4 + 2 * cp * 4),
        ),
    )(scale, shift, y)

    out = out_flat.reshape(n_pad, oh, ow, cp)[:n, :, :, :cout]
    return out


def downsample_block(x_nchw, w_oihw, gamma, beta, *,
                     neg_slope=0.0, compute_dtype=jnp.bfloat16):
    # NCHW adapter for PyTorch-layout parity; in a full model the activations stay
    # channels-last across all layers and only the model edges convert.
    x_nhwc = jnp.transpose(x_nchw, (0, 2, 3, 1))
    out_nhwc = conv_bn_act_downsample_nhwc(
        x_nhwc, w_oihw, gamma, beta, neg_slope=neg_slope, compute_dtype=compute_dtype)
    return jnp.transpose(out_nhwc, (0, 3, 1, 2))


# --------------------------------------------------------------------------- #
# Pure-JAX reference (conv + training-mode BN + ReLU).                          #
# --------------------------------------------------------------------------- #
def _reference(x_nchw, w_oihw, gamma, beta, *,
               neg_slope=0.0, compute_dtype=jnp.bfloat16):
    xc = x_nchw.astype(compute_dtype).astype(jnp.float32)
    wc = w_oihw.astype(compute_dtype).astype(jnp.float32)
    y = jax.lax.conv_general_dilated(
        xc, wc, window_strides=(2, 2), padding=((1, 1), (1, 1)),
        dimension_numbers=("NCHW", "OIHW", "NCHW"))
    mean = jnp.mean(y, axis=(0, 2, 3), keepdims=True)
    var = jnp.mean((y - mean) ** 2, axis=(0, 2, 3), keepdims=True)
    z = (y - mean) * jax.lax.rsqrt(var + EPS)
    z = z * gamma.reshape(1, -1, 1, 1) + beta.reshape(1, -1, 1, 1)
    return jnp.where(z >= 0, z, neg_slope * z)


if __name__ == "__main__":
    key = jax.random.PRNGKey(0)
    kx, kw_, kg, kb = jax.random.split(key, 4)

    N, CIN, H, W = 2, 4, 16, 16
    COUT = 8

    x = jax.random.normal(kx, (N, CIN, H, W), dtype=jnp.float32)
    w = jax.random.normal(kw_, (COUT, CIN, 3, 3), dtype=jnp.float32) * 0.1
    gamma = 1.0 + 0.1 * jax.random.normal(kg, (COUT,), dtype=jnp.float32)
    beta = 0.1 * jax.random.normal(kb, (COUT,), dtype=jnp.float32)

    out = jax.block_until_ready(downsample_block(x, w, gamma, beta))
    ref = jax.block_until_ready(_reference(x, w, gamma, beta))

    assert out.shape == (N, COUT, H // 2, W // 2), out.shape
    # Tolerance covers the bf16 storage of the intermediate conv activation
    # (unit roundoff 2^-8 ~= 3.9e-3 relative) on top of bf16-input matmuls.
    err = float(jnp.max(jnp.abs(out - ref)))
    assert jnp.allclose(out, ref, rtol=5e-3, atol=5e-3), err

    print("KERNEL_OK")
</pallas_src>

<mosaic_0001>
module attributes {stable_mosaic.version = 11 : i64} {
  func.func @_conv_stats_kernel(%arg0: i32, %arg1: memref<2x72x12xbf16, #tpu.memory_space<vmem>>, %arg2: memref<2x72x12xbf16, #tpu.memory_space<vmem>>, %arg3: memref<3x12x128xbf16, #tpu.memory_space<vmem>>, %arg4: memref<128x128xbf16, #tpu.memory_space<vmem>>, %arg5: memref<8x128xf32, #tpu.memory_space<vmem>>, %arg6: memref<8x128xf32, #tpu.memory_space<vmem>>, %arg7: memref<128x128xf32, #tpu.memory_space<vmem>>) attributes {dimension_semantics = [#tpu.dimension_semantics<parallel>], iteration_bounds = array<i64: 1>, scalar_prefetch = 0 : i64, scratch_operands = 1 : i64, tpu.core_type = #tpu.core_type<tc>, window_params = [{transform_indices = @transform_0, window_bounds = array<i64: 2, 72, 12>}, {transform_indices = @transform_1, window_bounds = array<i64: 2, 72, 12>}, {pipeline_mode = #tpu.pipeline_mode<synchronous>, transform_indices = @transform_2, window_bounds = array<i64: 3, 12, 128>}, {transform_indices = @transform_3, window_bounds = array<i64: 128, 128>}, {transform_indices = @transform_4, window_bounds = array<i64: 8, 128>}, {transform_indices = @transform_5, window_bounds = array<i64: 8, 128>}]} {
    %c0 = arith.constant 0 : index
    %c0_0 = arith.constant 0 : index
    %c0_1 = arith.constant 0 : index
    %0 = vector.load %arg1[%c0, %c0_0, %c0_1] : memref<2x72x12xbf16, #tpu.memory_space<vmem>>, vector<2x64x12xbf16>
    %1 = vector.shape_cast %0 : vector<2x64x12xbf16> to vector<128x12xbf16>
    %c0_2 = arith.constant 0 : index
    %c0_3 = arith.constant 0 : index
    %c0_4 = arith.constant 0 : index
    %2 = vector.load %arg3[%c0_2, %c0_3, %c0_4] : memref<3x12x128xbf16, #tpu.memory_space<vmem>>, vector<1x12x128xbf16>
    %3 = vector.shape_cast %2 : vector<1x12x128xbf16> to vector<12x128xbf16>
    %cst = arith.constant dense<0.000000e+00> : vector<128x128xf32>
    %4 = tpu.matmul %1, %3, %cst {dimension_numbers = #tpu.dot_dimension_numbers<[1], [0], [0], [1], [0, 0, 1, 1], [], []>} : vector<128x12xbf16>, vector<12x128xbf16>, vector<128x128xf32> -> vector<128x128xf32>
    %c0_5 = arith.constant 0 : index
    %c0_6 = arith.constant 0 : index
    %5 = vector.load %arg7[%c0_5, %c0_6] : memref<128x128xf32, #tpu.memory_space<vmem>>, vector<128x128xf32>
    tpu.vector_store %arg7[%c0_5, %c0_6], %4 {strides = array<i32>} : memref<128x128xf32, #tpu.memory_space<vmem>>, vector<128x128xf32>,
    %c0_7 = arith.constant 0 : index
    %c0_8 = arith.constant 0 : index
    %c0_9 = arith.constant 0 : index
    %6 = vector.load %arg2[%c0_7, %c0_8, %c0_9] : memref<2x72x12xbf16, #tpu.memory_space<vmem>>, vector<2x64x12xbf16>
    %7 = vector.shape_cast %6 : vector<2x64x12xbf16> to vector<128x12xbf16>
    %c1 = arith.constant 1 : index
    %c0_10 = arith.constant 0 : index
    %c0_11 = arith.constant 0 : index
    %8 = vector.load %arg3[%c1, %c0_10, %c0_11] : memref<3x12x128xbf16, #tpu.memory_space<vmem>>, vector<1x12x128xbf16>
    %9 = vector.shape_cast %8 : vector<1x12x128xbf16> to vector<12x128xbf16>
    %cst_12 = arith.constant dense<0.000000e+00> : vector<128x128xf32>
    %10 = tpu.matmul %7, %9, %cst_12 {dimension_numbers = #tpu.dot_dimension_numbers<[1], [0], [0], [1], [0, 0, 1, 1], [], []>} : vector<128x12xbf16>, vector<12x128xbf16>, vector<128x128xf32> -> vector<128x128xf32>
    %c0_13 = arith.constant 0 : index
    %c0_14 = arith.constant 0 : index
    %11 = vector.load %arg7[%c0_13, %c0_14] : memref<128x128xf32, #tpu.memory_space<vmem>>, vector<128x128xf32>
    %12 = arith.addf %11, %10 : vector<128x128xf32>
    %c0_15 = arith.constant 0 : index
    %c0_16 = arith.constant 0 : index
    %13 = vector.load %arg7[%c0_15, %c0_16] : memref<128x128xf32, #tpu.memory_space<vmem>>, vector<128x128xf32>
    tpu.vector_store %arg7[%c0_15, %c0_16], %12 {strides = array<i32>} : memref<128x128xf32, #tpu.memory_space<vmem>>, vector<128x128xf32>,
    %c0_17 = arith.constant 0 : index
    %c8 = arith.constant 8 : index
    %c0_18 = arith.constant 0 : index
    %14 = vector.load %arg1[%c0_17, %c8, %c0_18] : memref<2x72x12xbf16, #tpu.memory_space<vmem>>, vector<2x64x12xbf16>
    %15 = vector.shape_cast %14 : vector<2x64x12xbf16> to vector<128x12xbf16>
    %c2 = arith.constant 2 : index
    %c0_19 = arith.constant 0 : index
    %c0_20 = arith.constant 0 : index
    %16 = vector.load %arg3[%c2, %c0_19, %c0_20] : memref<3x12x128xbf16, #tpu.memory_space<vmem>>, vector<1x12x128xbf16>
    %17 = vector.shape_cast %16 : vector<1x12x128xbf16> to vector<12x128xbf16>
    %cst_21 = arith.constant dense<0.000000e+00> : vector<128x128xf32>
    %18 = tpu.matmul %15, %17, %cst_21 {dimension_numbers = #tpu.dot_dimension_numbers<[1], [0], [0], [1], [0, 0, 1, 1], [], []>} : vector<128x12xbf16>, vector<12x128xbf16>, vector<128x128xf32> -> vector<128x128xf32>
    %c0_22 = arith.constant 0 : index
    %c0_23 = arith.constant 0 : index
    %19 = vector.load %arg7[%c0_22, %c0_23] : memref<128x128xf32, #tpu.memory_space<vmem>>, vector<128x128xf32>
    %20 = arith.addf %19, %18 : vector<128x128xf32>
    %c0_24 = arith.constant 0 : index
    %c0_25 = arith.constant 0 : index
    %21 = vector.load %arg7[%c0_24, %c0_25] : memref<128x128xf32, #tpu.memory_space<vmem>>, vector<128x128xf32>
    tpu.vector_store %arg7[%c0_24, %c0_25], %20 {strides = array<i32>} : memref<128x128xf32, #tpu.memory_space<vmem>>, vector<128x128xf32>,
    %cst_26 = arith.constant 0.000000e+00 : f32
    %22 = vector.broadcast %cst_26 : f32 to vector<1x128xf32>
    %cst_27 = arith.constant 0.000000e+00 : f32
    %23 = vector.broadcast %cst_27 : f32 to vector<1x128xf32>
    %c0_28 = arith.constant 0 : index
    %c0_29 = arith.constant 0 : index
    %24 = vector.load %arg7[%c0_28, %c0_29] : memref<128x128xf32, #tpu.memory_space<vmem>>, vector<64x128xf32>
    %25 = arith.truncf %24 : vector<64x128xf32> to vector<64x128xbf16>
    %c0_30 = arith.constant 0 : index
    %c0_31 = arith.constant 0 : index
    %26 = vector.load %arg4[%c0_30, %c0_31] : memref<128x128xbf16, #tpu.memory_space<vmem>>, vector<64x128xbf16>
    tpu.vector_store %arg4[%c0_30, %c0_31], %25 {strides = array<i32>} : memref<128x128xbf16, #tpu.memory_space<vmem>>, vector<64x128xbf16>,
    %cst_32 = arith.constant dense<0.000000e+00> : vector<128xf32>
    %27 = vector.multi_reduction <add>, %24, %cst_32 [0] : vector<64x128xf32> to vector<128xf32>
    %28 = vector.shape_cast %27 : vector<128xf32> to vector<1x128xf32>
    %29 = arith.addf %22, %28 : vector<1x128xf32>
    %30 = arith.mulf %24, %24 : vector<64x128xf32>
    %cst_33 = arith.constant dense<0.000000e+00> : vector<128xf32>
    %31 = vector.multi_reduction <add>, %30, %cst_33 [0] : vector<64x128xf32> to vector<128xf32>
    %32 = vector.shape_cast %31 : vector<128xf32> to vector<1x128xf32>
    %33 = arith.addf %23, %32 : vector<1x128xf32>
    %c64 = arith.constant 64 : index
    %c0_34 = arith.constant 0 : index
    %34 = vector.load %arg7[%c64, %c0_34] : memref<128x128xf32, #tpu.memory_space<vmem>>, vector<64x128xf32>
    %35 = arith.truncf %34 : vector<64x128xf32> to vector<64x128xbf16>
    %c64_35 = arith.constant 64 : index
    %c0_36 = arith.constant 0 : index
    %36 = vector.load %arg4[%c64_35, %c0_36] : memref<128x128xbf16, #tpu.memory_space<vmem>>, vector<64x128xbf16>
    tpu.vector_store %arg4[%c64_35, %c0_36], %35 {strides = array<i32>} : memref<128x128xbf16, #tpu.memory_space<vmem>>, vector<64x128xbf16>,
    %cst_37 = arith.constant dense<0.000000e+00> : vector<128xf32>
    %37 = vector.multi_reduction <add>, %34, %cst_37 [0] : vector<64x128xf32> to vector<128xf32>
    %38 = vector.shape_cast %37 : vector<128xf32> to vector<1x128xf32>
    %39 = arith.addf %29, %38 : vector<1x128xf32>
    %40 = arith.mulf %34, %34 : vector<64x128xf32>
    %cst_38 = arith.constant dense<0.000000e+00> : vector<128xf32>
    %41 = vector.multi_reduction <add>, %40, %cst_38 [0] : vector<64x128xf32> to vector<128xf32>
    %42 = vector.shape_cast %41 : vector<128xf32> to vector<1x128xf32>
    %43 = arith.addf %33, %42 : vector<1x128xf32>
    %44 = vector.shape_cast %39 : vector<1x128xf32> to vector<1x128xf32>
    %45 = vector.broadcast %44 : vector<1x128xf32> to vector<8x128xf32>
    %c0_39 = arith.constant 0 : index
    %c0_40 = arith.constant 0 : index
    %46 = vector.load %arg5[%c0_39, %c0_40] : memref<8x128xf32, #tpu.memory_space<vmem>>, vector<8x128xf32>
    tpu.vector_store %arg5[%c0_39, %c0_40], %45 {strides = array<i32>} : memref<8x128xf32, #tpu.memory_space<vmem>>, vector<8x128xf32>,
    %47 = vector.shape_cast %43 : vector<1x128xf32> to vector<1x128xf32>
    %48 = vector.broadcast %47 : vector<1x128xf32> to vector<8x128xf32>
    %c0_41 = arith.constant 0 : index
    %c0_42 = arith.constant 0 : index
    %49 = vector.load %arg6[%c0_41, %c0_42] : memref<8x128xf32, #tpu.memory_space<vmem>>, vector<8x128xf32>
    tpu.vector_store %arg6[%c0_41, %c0_42], %48 {strides = array<i32>} : memref<8x128xf32, #tpu.memory_space<vmem>>, vector<8x128xf32>,
    return
  }
  func.func @transform_0(%arg0: i32) -> (i32, i32, i32) {
    %c0_i32 = arith.constant 0 : i32
    %c0_i32_0 = arith.constant 0 : i32
    %c0_i32_1 = arith.constant 0 : i32
    return %arg0, %c0_i32, %c0_i32_0 : i32, i32, i32
  }
  func.func @transform_1(%arg0: i32) -> (i32, i32, i32) {
    %c0_i32 = arith.constant 0 : i32
    %c0_i32_0 = arith.constant 0 : i32
    %c0_i32_1 = arith.constant 0 : i32
    return %arg0, %c0_i32, %c0_i32_0 : i32, i32, i32
  }
  func.func @transform_2(%arg0: i32) -> (i32, i32, i32) {
    %c0_i32 = arith.constant 0 : i32
    %c0_i32_0 = arith.constant 0 : i32
    %c0_i32_1 = arith.constant 0 : i32
    %c0_i32_2 = arith.constant 0 : i32
    return %c0_i32, %c0_i32_0, %c0_i32_1 : i32, i32, i32
  }
  func.func @transform_3(%arg0: i32) -> (i32, i32) {
    %c0_i32 = arith.constant 0 : i32
    %c0_i32_0 = arith.constant 0 : i32
    return %arg0, %c0_i32 : i32, i32
  }
  func.func @transform_4(%arg0: i32) -> (i32, i32) {
    %c0_i32 = arith.constant 0 : i32
    %c0_i32_0 = arith.constant 0 : i32
    return %arg0, %c0_i32 : i32, i32
  }
  func.func @transform_5(%arg0: i32) -> (i32, i32) {
    %c0_i32 = arith.constant 0 : i32
    %c0_i32_0 = arith.constant 0 : i32
    return %arg0, %c0_i32 : i32, i32
  }
}

</mosaic_0001>

<llo_original>
// kernel: tpu_custom_call.1
$region0: #{tpu_custom_call.1}
  #allocation0 [shape = 'u32[]', space=smem, size = 0x4, offset = 0x4, fixed_abs, tag = 'smem constant byte address 0x4 - core index']
  #allocation1 [shape = 'u32[144,128]{1,0:T(1,128)}', space=vmem, size = 0x12000, scoped, tag = 'internal scratch']
  #allocation2 [shape = 'f32[128,128]{1,0:T(8,128)}', space=vmem, size = 0x10000, scoped, tag = 'scratch operand']
  %s0 = inlined_call_operand.vmem [shape: bf16[2,72,12], index: 0, kind: input, shape index: {}]
  %s1 = inlined_call_operand.vmem [shape: bf16[2,72,12], index: 1, kind: input, shape index: {}]
  %s2 = inlined_call_operand.vmem [shape: bf16[3,12,128], index: 2, kind: input, shape index: {}]
  %s3 = inlined_call_operand.hbm [shape: bf16[128,128], index: 3, kind: output, shape index: {0}]
  %s4 = inlined_call_operand.hbm [shape: f32[8,128], index: 4, kind: output, shape index: {1}]
  %s5 = inlined_call_operand.hbm [shape: f32[8,128], index: 5, kind: output, shape index: {2}]
  %6 = xla_tuple %s3, %s4, %s5
  %s7 = sld [smem:[#allocation0]]
  $region38: #{tpu_custom_call.1} parent=0
    _
  %s9 = ssub.s32 1, %s7
  %s10 = scalar_select 0, %s9, %s7
  $region1: #{tpu_custom_call.1} parent=0
    #allocation3 [shape = 'u8[32768]{0}', space=vmem, size = 0x8000, scoped, tag = 'output window, operand 0, single buffered']
    #allocation4 [shape = 's32[1]{0}', space=sflag, size = 0x4, scoped, tag = 'scoped memory for tpu_custom_call.1']
    #allocation5 [shape = 'u8[4096]{0}', space=vmem, size = 0x1000, scoped, tag = 'output window, operand 1, single buffered']
    #allocation6 [shape = 's32[1]{0}', space=sflag, size = 0x4, scoped, tag = 'scoped memory for tpu_custom_call.1']
    #allocation7 [shape = 'u8[4096]{0}', space=vmem, size = 0x1000, scoped, tag = 'output window, operand 2, single buffered']
    %11 = vsyncpa [#allocation4], 0
    %12 = vsyncpa [#allocation6], 0
    // Predicated region
    $region2: #{tpu_custom_call.1} parent=1 // pred_check
      _
    $region3: #{tpu_custom_call.1} parent=1 // pred_check_branch
      %14 = sbr.rel (0) target = $region5
    $region4: #{tpu_custom_call.1} parent=1 // pred_region
      _
    $region5: #{tpu_custom_call.1} parent=1 // pred_fallthru
      _
    // Predicated region
    $region6: #{tpu_custom_call.1} parent=1 // pred_check
      _
    $region7: #{tpu_custom_call.1} parent=1 // pred_check_branch
      %16 = sbr.rel (0) target = $region9
    $region8: #{tpu_custom_call.1} parent=1 // pred_region
      _
    $region9: #{tpu_custom_call.1} parent=1 // pred_fallthru
      _
    // Predicated region
    $region10: #{tpu_custom_call.1} parent=1 // pred_check
      _
    $region11: #{tpu_custom_call.1} parent=1 // pred_check_branch
      %18 = sbr.rel (0) target = $region13
    $region12: #{tpu_custom_call.1} parent=1 // pred_region
      _
    $region13: #{tpu_custom_call.1} parent=1 // pred_fallthru
      _
    %v20 = vld [vmem:[%s0] sm:$0xf]
    %v21 = vld [vmem:[%s0 + $0x4] sm:$0xf]
    %v22 = vld [vmem:[%s0 + $0x8] sm:$0xf]
    %v23 = vld [vmem:[%s0 + $0xc] sm:$0xf]
    %v24 = vld [vmem:[%s0 + $0x10] sm:$0xf]
    %v25 = vld [vmem:[%s0 + $0x14] sm:$0xf]
    %v26 = vld [vmem:[%s0 + $0x18] sm:$0xf]
    %v27 = vld [vmem:[%s0 + $0x1c] sm:$0xf]
    %v28 = vld [vmem:[%s0 + $0x24] sm:$0xf]
    %v29 = vld [vmem:[%s0 + $0x28] sm:$0xf]
    %v30 = vld [vmem:[%s0 + $0x2c] sm:$0xf]
    %v31 = vld [vmem:[%s0 + $0x30] sm:$0xf]
    %v32 = vld [vmem:[%s0 + $0x34] sm:$0xf]
    %v33 = vld [vmem:[%s0 + $0x38] sm:$0xf]
    %v34 = vld [vmem:[%s0 + $0x3c] sm:$0xf]
    %v35 = vld [vmem:[%s0 + $0x40] sm:$0xf]
    %v36 = vld [vmem:[%s2] sm:$0xf]
    %v37 = vld [vmem:[%s2 + $0x4] sm:$0x3]
    %v54 = vunpack.c.l.b16 %v20
    %v55 = vunpack.c.l.b16 %v21
    %v56 = vunpack.c.l.b16 %v22
    %v57 = vunpack.c.l.b16 %v23
    %v58 = vunpack.c.l.b16 %v24
    %v59 = vunpack.c.l.b16 %v25
    %v60 = vunpack.c.l.b16 %v26
    %v61 = vunpack.c.l.b16 %v27
    %v62 = vunpack.c.l.b16 %v28
    %v63 = vunpack.c.l.b16 %v29
    %v64 = vunpack.c.l.b16 %v30
    %v65 = vunpack.c.l.b16 %v31
    %v66 = vunpack.c.l.b16 %v32
    %v67 = vunpack.c.l.b16 %v33
    %v68 = vunpack.c.l.b16 %v34
    %v69 = vunpack.c.l.b16 %v35
    %v70 = vpack.c.b16 %v55, %v54
    %v71 = vpack.c.b16 %v57, %v56
    %v72 = vpack.c.b16 %v59, %v58
    %v73 = vpack.c.b16 %v61, %v60
    %v74 = vpack.c.b16 %v63, %v62
    %v75 = vpack.c.b16 %v65, %v64
    %v76 = vpack.c.b16 %v67, %v66
    %v77 = vpack.c.b16 %v69, %v68
    %v80 = vunpack.c.l.b16 %v36
    %v81 = vunpack.c.l.b16 %v37
    %v82 = vpack.c.b16 %v81, %v80
    %vm83 = vcmask 97280
    %v85 = vsel %vm83, %v70, 0
    %v88 = vsel %vm83, %v71, 0
    %v91 = vsel %vm83, %v72, 0
    %v94 = vsel %vm83, %v73, 0
    %v97 = vsel %vm83, %v74, 0
    %v100 = vsel %vm83, %v75, 0
    %v103 = vsel %vm83, %v76, 0
    %v106 = vsel %vm83, %v77, 0
    %vm108 = vcmask 1045504
    %v110 = vsel %vm108, %v82, 0
    %112 = vmatprep.subr.bf16.mxu0 0
    %113 = vmatpush1.bf16.msra.mxu0 %v110
    %114 = vmatprep.subr.bf16.mxu0 0
    %115 = vmatpush1.bf16.msra.mxu0 0
    %116 = vmatprep.subr.bf16.mxu0 0
    %117 = vmatpush1.bf16.msra.mxu0 0
    %118 = vmatprep.subr.bf16.mxu0 0
    %119 = vmatpush1.bf16.msra.mxu0 0
    %120 = vmatprep.subr.bf16.mxu0 0
    %121 = vmatpush1.bf16.msra.mxu0 0
    %122 = vmatprep.subr.bf16.mxu0 0
    %123 = vmatpush1.bf16.msra.mxu0 0
    %124 = vmatprep.subr.bf16.mxu0 0
    %125 = vmatpush1.bf16.msra.mxu0 0
    %126 = vmatprep.subr.bf16.mxu0 0
    %127 = vmatpush1.bf16.msra.mxu0 0
    %128 = vmatprep.subr.bf16.mxu0 0
    %129 = vmatpush1.bf16.msra.mxu0 0
    %130 = vmatprep.subr.bf16.mxu0 0
    %131 = vmatpush1.bf16.msra.mxu0 0
    %132 = vmatprep.subr.bf16.mxu0 0
    %133 = vmatpush1.bf16.msra.mxu0 0
    %134 = vmatprep.subr.bf16.mxu0 0
    %135 = vmatpush1.bf16.msra.mxu0 0
    %136 = vmatprep.subr.bf16.mxu0 0
    %137 = vmatpush1.bf16.msra.mxu0 0
    %138 = vmatprep.subr.bf16.mxu0 0
    %139 = vmatpush1.bf16.msra.mxu0 0
    %140 = vmatprep.subr.bf16.mxu0 0
    %141 = vmatpush1.bf16.msra.mxu0 0
    %142 = vmatprep.subr.bf16.mxu0 0
    %143 = vmatpush1.bf16.msra.mxu0 0
    %144 = vmatprep.mubr.bf16.mxu0 0
    %145 = vmatmul.mubr.bf16.gmra.mrb[0].mxu0 %v85
    %v146 = vpop.f32.mrb[0].mxu0
    %v147 = vadd.f32 0.0, %v146
    %v148 = vpop.f32.mrb[0].mxu0
    %v149 = vpop.f32.mrb[0].mxu0
    %v150 = vadd.f32 0.0, %v149
    %v151 = vpop.f32.mrb[0].mxu0
    %152 = vmatprep.mubr.bf16.mxu0 0
    %153 = vmatmul.mubr.bf16.gmra.mrb[0].mxu0 %v88
    %v154 = vpop.f32.mrb[0].mxu0
    %v155 = vadd.f32 0.0, %v154
    %v156 = vpop.f32.mrb[0].mxu0
    %v157 = vpop.f32.mrb[0].mxu0
    %v158 = vadd.f32 0.0, %v157
    %v159 = vpop.f32.mrb[0].mxu0
    %160 = vmatprep.mubr.bf16.mxu0 0
    %161 = vmatmul.mubr.bf16.gmra.mrb[0].mxu0 %v91
    %v162 = vpop.f32.mrb[0].mxu0
    %v163 = vadd.f32 0.0, %v162
    %v164 = vpop.f32.mrb[0].mxu0
    %v165 = vpop.f32.mrb[0].mxu0
    %v166 = vadd.f32 0.0, %v165
    %v167 = vpop.f32.mrb[0].mxu0
    %168 = vmatprep.mubr.bf16.mxu0 0
    %169 = vmatmul.mubr.bf16.gmra.mrb[0].mxu0 %v94
    %v170 = vpop.f32.mrb[0].mxu0
    %v171 = vadd.f32 0.0, %v170
    %v172 = vpop.f32.mrb[0].mxu0
    %v173 = vpop.f32.mrb[0].mxu0
    %v174 = vadd.f32 0.0, %v173
    %v175 = vpop.f32.mrb[0].mxu0
    %176 = vmatprep.mubr.bf16.mxu0 0
    %177 = vmatmul.mubr.bf16.gmra.mrb[0].mxu0 %v97
    %v178 = vpop.f32.mrb[0].mxu0
    %v179 = vadd.f32 0.0, %v178
    %v180 = vpop.f32.mrb[0].mxu0
    %v181 = vpop.f32.mrb[0].mxu0
    %v182 = vadd.f32 0.0, %v181
    %v183 = vpop.f32.mrb[0].mxu0
    %184 = vmatprep.mubr.bf16.mxu0 0
    %185 = vmatmul.mubr.bf16.gmra.mrb[0].mxu0 %v100
    %v186 = vpop.f32.mrb[0].mxu0
    %v187 = vadd.f32 0.0, %v186
    %v188 = vpop.f32.mrb[0].mxu0
    %v189 = vpop.f32.mrb[0].mxu0
    %v190 = vadd.f32 0.0, %v189
    %v191 = vpop.f32.mrb[0].mxu0
    %192 = vmatprep.mubr.bf16.mxu0 0
    %193 = vmatmul.mubr.bf16.gmra.mrb[0].mxu0 %v103
    %v194 = vpop.f32.mrb[0].mxu0
    %v195 = vadd.f32 0.0, %v194
    %v196 = vpop.f32.mrb[0].mxu0
    %v197 = vpop.f32.mrb[0].mxu0
    %v198 = vadd.f32 0.0, %v197
    %v199 = vpop.f32.mrb[0].mxu0
    %200 = vmatprep.mubr.bf16.mxu0 0
    %201 = vmatmul.mubr.bf16.gmra.mrb[0].mxu0 %v106
    %v202 = vpop.f32.mrb[0].mxu0
    %v203 = vadd.f32 0.0, %v202
    %v204 = vpop.f32.mrb[0].mxu0
    %v205 = vpop.f32.mrb[0].mxu0
    %v206 = vadd.f32 0.0, %v205
    %v207 = vpop.f32.mrb[0].mxu0
    %208 = vdwg.mxu0
    %209 = vst [vmem:[#allocation2] sm:$0xff] %v147
    %210 = vst [vmem:[#allocation2 + $0x8] sm:$0xff] %v150
    %211 = vst [vmem:[#allocation2 + $0x10] sm:$0xff] %v155
    %212 = vst [vmem:[#allocation2 + $0x18] sm:$0xff] %v158
    %213 = vst [vmem:[#allocation2 + $0x20] sm:$0xff] %v163
    %214 = vst [vmem:[#allocation2 + $0x28] sm:$0xff] %v166
    %215 = vst [vmem:[#allocation2 + $0x30] sm:$0xff] %v171
    %216 = vst [vmem:[#allocation2 + $0x38] sm:$0xff] %v174
    %217 = vst [vmem:[#allocation2 + $0x40] sm:$0xff] %v179
    %218 = vst [vmem:[#allocation2 + $0x48] sm:$0xff] %v182
    %219 = vst [vmem:[#allocation2 + $0x50] sm:$0xff] %v187
    %220 = vst [vmem:[#allocation2 + $0x58] sm:$0xff] %v190
    %221 = vst [vmem:[#allocation2 + $0x60] sm:$0xff] %v195
    %222 = vst [vmem:[#allocation2 + $0x68] sm:$0xff] %v198
    %223 = vst [vmem:[#allocation2 + $0x70] sm:$0xff] %v203
    %224 = vst [vmem:[#allocation2 + $0x78] sm:$0xff] %v206
    %v225 = vld [vmem:[%s1] sm:$0xf]
    %v226 = vld [vmem:[%s1 + $0x4] sm:$0xf]
    %v227 = vld [vmem:[%s1 + $0x8] sm:$0xf]
    %v228 = vld [vmem:[%s1 + $0xc] sm:$0xf]
    %v229 = vld [vmem:[%s1 + $0x10] sm:$0xf]
    %v230 = vld [vmem:[%s1 + $0x14] sm:$0xf]
    %v231 = vld [vmem:[%s1 + $0x18] sm:$0xf]
    %v232 = vld [vmem:[%s1 + $0x1c] sm:$0xf]
    %v233 = vld [vmem:[%s1 + $0x24] sm:$0xf]
    %v234 = vld [vmem:[%s1 + $0x28] sm:$0xf]
    %v235 = vld [vmem:[%s1 + $0x2c] sm:$0xf]
    %v236 = vld [vmem:[%s1 + $0x30] sm:$0xf]
    %v237 = vld [vmem:[%s1 + $0x34] sm:$0xf]
    %v238 = vld [vmem:[%s1 + $0x38] sm:$0xf]
    %v239 = vld [vmem:[%s1 + $0x3c] sm:$0xf]
    %v240 = vld [vmem:[%s1 + $0x40] sm:$0xf]
    %s241 = scalar_lea.vmem %s2, 8
    %v242 = vld [vmem:[%s241] sm:$0xf]
    %v243 = vld [vmem:[%s241 + $0x4] sm:$0x3]
    %v260 = vunpack.c.l.b16 %v225
    %v261 = vunpack.c.l.b16 %v226
    %v262 = vunpack.c.l.b16 %v227
    %v263 = vunpack.c.l.b16 %v228
    %v264 = vunpack.c.l.b16 %v229
    %v265 = vunpack.c.l.b16 %v230
    %v266 = vunpack.c.l.b16 %v231
    %v267 = vunpack.c.l.b16 %v232
    %v268 = vunpack.c.l.b16 %v233
    %v269 = vunpack.c.l.b16 %v234
    %v270 = vunpack.c.l.b16 %v235
    %v271 = vunpack.c.l.b16 %v236
    %v272 = vunpack.c.l.b16 %v237
    %v273 = vunpack.c.l.b16 %v238
    %v274 = vunpack.c.l.b16 %v239
    %v275 = vunpack.c.l.b16 %v240
    %v276 = vpack.c.b16 %v261, %v260
    %v277 = vpack.c.b16 %v263, %v262
    %v278 = vpack.c.b16 %v265, %v264
    %v279 = vpack.c.b16 %v267, %v266
    %v280 = vpack.c.b16 %v269, %v268
    %v281 = vpack.c.b16 %v271, %v270
    %v282 = vpack.c.b16 %v273, %v272
    %v283 = vpack.c.b16 %v275, %v274
    %v286 = vunpack.c.l.b16 %v242
    %v287 = vunpack.c.l.b16 %v243
    %v288 = vpack.c.b16 %v287, %v286
    %v290 = vsel %vm83, %v276, 0
    %v293 = vsel %vm83, %v277, 0
    %v296 = vsel %vm83, %v278, 0
    %v299 = vsel %vm83, %v279, 0
    %v302 = vsel %vm83, %v280, 0
    %v305 = vsel %vm83, %v281, 0
    %v308 = vsel %vm83, %v282, 0
    %v311 = vsel %vm83, %v283, 0
    %v314 = vsel %vm108, %v288, 0
    %316 = vmatprep.subr.bf16.mxu0 0
    %317 = vmatpush1.bf16.msra.mxu0 %v314
    %318 = vmatprep.subr.bf16.mxu0 0
    %319 = vmatpush1.bf16.msra.mxu0 0
    %320 = vmatprep.subr.bf16.mxu0 0
    %321 = vmatpush1.bf16.msra.mxu0 0
    %322 = vmatprep.subr.bf16.mxu0 0
    %323 = vmatpush1.bf16.msra.mxu0 0
    %324 = vmatprep.subr.bf16.mxu0 0
    %325 = vmatpush1.bf16.msra.mxu0 0
    %326 = vmatprep.subr.bf16.mxu0 0
    %327 = vmatpush1.bf16.msra.mxu0 0
    %328 = vmatprep.subr.bf16.mxu0 0
    %329 = vmatpush1.bf16.msra.mxu0 0
    %330 = vmatprep.subr.bf16.mxu0 0
    %331 = vmatpush1.bf16.msra.mxu0 0
    %332 = vmatprep.subr.bf16.mxu0 0
    %333 = vmatpush1.bf16.msra.mxu0 0
    %334 = vmatprep.subr.bf16.mxu0 0
    %335 = vmatpush1.bf16.msra.mxu0 0
    %336 = vmatprep.subr.bf16.mxu0 0
    %337 = vmatpush1.bf16.msra.mxu0 0
    %338 = vmatprep.subr.bf16.mxu0 0
    %339 = vmatpush1.bf16.msra.mxu0 0
    %340 = vmatprep.subr.bf16.mxu0 0
    %341 = vmatpush1.bf16.msra.mxu0 0
    %342 = vmatprep.subr.bf16.mxu0 0
    %343 = vmatpush1.bf16.msra.mxu0 0
    %344 = vmatprep.subr.bf16.mxu0 0
    %345 = vmatpush1.bf16.msra.mxu0 0
    %346 = vmatprep.subr.bf16.mxu0 0
    %347 = vmatpush1.bf16.msra.mxu0 0
    %348 = vmatprep.mubr.bf16.mxu0 0
    %349 = vmatmul.mubr.bf16.gmra.mrb[0].mxu0 %v290
    %v350 = vpop.f32.mrb[0].mxu0
    %v351 = vadd.f32 0.0, %v350
    %v352 = vpop.f32.mrb[0].mxu0
    %v353 = vpop.f32.mrb[0].mxu0
    %v354 = vadd.f32 0.0, %v353
    %v355 = vpop.f32.mrb[0].mxu0
    %356 = vmatprep.mubr.bf16.mxu0 0
    %357 = vmatmul.mubr.bf16.gmra.mrb[0].mxu0 %v293
    %v358 = vpop.f32.mrb[0].mxu0
    %v359 = vadd.f32 0.0, %v358
    %v360 = vpop.f32.mrb[0].mxu0
    %v361 = vpop.f32.mrb[0].mxu0
    %v362 = vadd.f32 0.0, %v361
    %v363 = vpop.f32.mrb[0].mxu0
    %364 = vmatprep.mubr.bf16.mxu0 0
    %365 = vmatmul.mubr.bf16.gmra.mrb[0].mxu0 %v296
    %v366 = vpop.f32.mrb[0].mxu0
    %v367 = vadd.f32 0.0, %v366
    %v368 = vpop.f32.mrb[0].mxu0
    %v369 = vpop.f32.mrb[0].mxu0
    %v370 = vadd.f32 0.0, %v369
    %v371 = vpop.f32.mrb[0].mxu0
    %372 = vmatprep.mubr.bf16.mxu0 0
    %373 = vmatmul.mubr.bf16.gmra.mrb[0].mxu0 %v299
    %v374 = vpop.f32.mrb[0].mxu0
    %v375 = vadd.f32 0.0, %v374
    %v376 = vpop.f32.mrb[0].mxu0
    %v377 = vpop.f32.mrb[0].mxu0
    %v378 = vadd.f32 0.0, %v377
    %v379 = vpop.f32.mrb[0].mxu0
    %380 = vmatprep.mubr.bf16.mxu0 0
    %381 = vmatmul.mubr.bf16.gmra.mrb[0].mxu0 %v302
    %v382 = vpop.f32.mrb[0].mxu0
    %v383 = vadd.f32 0.0, %v382
    %v384 = vpop.f32.mrb[0].mxu0
    %v385 = vpop.f32.mrb[0].mxu0
    %v386 = vadd.f32 0.0, %v385
    %v387 = vpop.f32.mrb[0].mxu0
    %388 = vmatprep.mubr.bf16.mxu0 0
    %389 = vmatmul.mubr.bf16.gmra.mrb[0].mxu0 %v305
    %v390 = vpop.f32.mrb[0].mxu0
    %v391 = vadd.f32 0.0, %v390
    %v392 = vpop.f32.mrb[0].mxu0
    %v393 = vpop.f32.mrb[0].mxu0
    %v394 = vadd.f32 0.0, %v393
    %v395 = vpop.f32.mrb[0].mxu0
    %396 = vmatprep.mubr.bf16.mxu0 0
    %397 = vmatmul.mubr.bf16.gmra.mrb[0].mxu0 %v308
    %v398 = vpop.f32.mrb[0].mxu0
    %v399 = vadd.f32 0.0, %v398
    %v400 = vpop.f32.mrb[0].mxu0
    %v401 = vpop.f32.mrb[0].mxu0
    %v402 = vadd.f32 0.0, %v401
    %v403 = vpop.f32.mrb[0].mxu0
    %404 = vmatprep.mubr.bf16.mxu0 0
    %405 = vmatmul.mubr.bf16.gmra.mrb[0].mxu0 %v311
    %v406 = vpop.f32.mrb[0].mxu0
    %v407 = vadd.f32 0.0, %v406
    %v408 = vpop.f32.mrb[0].mxu0
    %v409 = vpop.f32.mrb[0].mxu0
    %v410 = vadd.f32 0.0, %v409
    %v411 = vpop.f32.mrb[0].mxu0
    %412 = vdwg.mxu0
    %v413 = vld [vmem:[#allocation2] sm:$0xff]
    %v414 = vld [vmem:[#allocation2 + $0x8] sm:$0xff]
    %v415 = vld [vmem:[#allocation2 + $0x10] sm:$0xff]
    %v416 = vld [vmem:[#allocation2 + $0x18] sm:$0xff]
    %v417 = vld [vmem:[#allocation2 + $0x20] sm:$0xff]
    %v418 = vld [vmem:[#allocation2 + $0x28] sm:$0xff]
    %v419 = vld [vmem:[#allocation2 + $0x30] sm:$0xff]
    %v420 = vld [vmem:[#allocation2 + $0x38] sm:$0xff]
    %v421 = vld [vmem:[#allocation2 + $0x40] sm:$0xff]
    %v422 = vld [vmem:[#allocation2 + $0x48] sm:$0xff]
    %v423 = vld [vmem:[#allocation2 + $0x50] sm:$0xff]
    %v424 = vld [vmem:[#allocation2 + $0x58] sm:$0xff]
    %v425 = vld [vmem:[#allocation2 + $0x60] sm:$0xff]
    %v426 = vld [vmem:[#allocation2 + $0x68] sm:$0xff]
    %v427 = vld [vmem:[#allocation2 + $0x70] sm:$0xff]
    %v428 = vld [vmem:[#allocation2 + $0x78] sm:$0xff]
    %v429 = vadd.f32 %v413, %v351
    %v430 = vadd.f32 %v414, %v354
    %v431 = vadd.f32 %v415, %v359
    %v432 = vadd.f32 %v416, %v362
    %v433 = vadd.f32 %v417, %v367
    %v434 = vadd.f32 %v418, %v370
    %v435 = vadd.f32 %v419, %v375
    %v436 = vadd.f32 %v420, %v378
    %v437 = vadd.f32 %v421, %v383
    %v438 = vadd.f32 %v422, %v386
    %v439 = vadd.f32 %v423, %v391
    %v440 = vadd.f32 %v424, %v394
    %v441 = vadd.f32 %v425, %v399
    %v442 = vadd.f32 %v426, %v402
    %v443 = vadd.f32 %v427, %v407
    %v444 = vadd.f32 %v428, %v410
    %445 = vst [vmem:[#allocation2] sm:$0xff] %v429
    %446 = vst [vmem:[#allocation2 + $0x8] sm:$0xff] %v430
    %447 = vst [vmem:[#allocation2 + $0x10] sm:$0xff] %v431
    %448 = vst [vmem:[#allocation2 + $0x18] sm:$0xff] %v432
    %449 = vst [vmem:[#allocation2 + $0x20] sm:$0xff] %v433
    %450 = vst [vmem:[#allocation2 + $0x28] sm:$0xff] %v434
    %451 = vst [vmem:[#allocation2 + $0x30] sm:$0xff] %v435
    %452 = vst [vmem:[#allocation2 + $0x38] sm:$0xff] %v436
    %453 = vst [vmem:[#allocation2 + $0x40] sm:$0xff] %v437
    %454 = vst [vmem:[#allocation2 + $0x48] sm:$0xff] %v438
    %455 = vst [vmem:[#allocation2 + $0x50] sm:$0xff] %v439
    %456 = vst [vmem:[#allocation2 + $0x58] sm:$0xff] %v440
    %457 = vst [vmem:[#allocation2 + $0x60] sm:$0xff] %v441
    %458 = vst [vmem:[#allocation2 + $0x68] sm:$0xff] %v442
    %459 = vst [vmem:[#allocation2 + $0x70] sm:$0xff] %v443
    %460 = vst [vmem:[#allocation2 + $0x78] sm:$0xff] %v444
    %v461 = vld [vmem:[%s0 + $0x4] sm:$0xf]
    %v462 = vld [vmem:[%s0 + $0x8] sm:$0xf]
    %v463 = vld [vmem:[%s0 + $0xc] sm:$0xf]
    %v464 = vld [vmem:[%s0 + $0x10] sm:$0xf]
    %v465 = vld [vmem:[%s0 + $0x14] sm:$0xf]
    %v466 = vld [vmem:[%s0 + $0x18] sm:$0xf]
    %v467 = vld [vmem:[%s0 + $0x1c] sm:$0xf]
    %v468 = vld [vmem:[%s0 + $0x20] sm:$0xf]
    %v469 = vld [vmem:[%s0 + $0x28] sm:$0xf]
    %v470 = vld [vmem:[%s0 + $0x2c] sm:$0xf]
    %v471 = vld [vmem:[%s0 + $0x30] sm:$0xf]
    %v472 = vld [vmem:[%s0 + $0x34] sm:$0xf]
    %v473 = vld [vmem:[%s0 + $0x38] sm:$0xf]
    %v474 = vld [vmem:[%s0 + $0x3c] sm:$0xf]
    %v475 = vld [vmem:[%s0 + $0x40] sm:$0xf]
    %v476 = vld [vmem:[%s0 + $0x44] sm:$0xf]
    %s477 = scalar_lea.vmem %s2, 16
    %v478 = vld [vmem:[%s477] sm:$0xf]
    %v479 = vld [vmem:[%s477 + $0x4] sm:$0x3]
    %v496 = vunpack.c.l.b16 %v461
    %v497 = vunpack.c.l.b16 %v462
    %v498 = vunpack.c.l.b16 %v463
    %v499 = vunpack.c.l.b16 %v464
    %v500 = vunpack.c.l.b16 %v465
    %v501 = vunpack.c.l.b16 %v466
    %v502 = vunpack.c.l.b16 %v467
    %v503 = vunpack.c.l.b16 %v468
    %v504 = vunpack.c.l.b16 %v469
    %v505 = vunpack.c.l.b16 %v470
    %v506 = vunpack.c.l.b16 %v471
    %v507 = vunpack.c.l.b16 %v472
    %v508 = vunpack.c.l.b16 %v473
    %v509 = vunpack.c.l.b16 %v474
    %v510 = vunpack.c.l.b16 %v475
    %v511 = vunpack.c.l.b16 %v476
    %v512 = vpack.c.b16 %v497, %v496
    %v513 = vpack.c.b16 %v499, %v498
    %v514 = vpack.c.b16 %v501, %v500
    %v515 = vpack.c.b16 %v503, %v502
    %v516 = vpack.c.b16 %v505, %v504
    %v517 = vpack.c.b16 %v507, %v506
    %v518 = vpack.c.b16 %v509, %v508
    %v519 = vpack.c.b16 %v511, %v510
    %v522 = vunpack.c.l.b16 %v478
    %v523 = vunpack.c.l.b16 %v479
    %v524 = vpack.c.b16 %v523, %v522
    %v526 = vsel %vm83, %v512, 0
    %v529 = vsel %vm83, %v513, 0
    %v532 = vsel %vm83, %v514, 0
    %v535 = vsel %vm83, %v515, 0
    %v538 = vsel %vm83, %v516, 0
    %v541 = vsel %vm83, %v517, 0
    %v544 = vsel %vm83, %v518, 0
    %v547 = vsel %vm83, %v519, 0
    %v550 = vsel %vm108, %v524, 0
    %552 = vmatprep.subr.bf16.mxu0 0
    %553 = vmatpush1.bf16.msra.mxu0 %v550
    %554 = vmatprep.subr.bf16.mxu0 0
    %555 = vmatpush1.bf16.msra.mxu0 0
    %556 = vmatprep.subr.bf16.mxu0 0
    %557 = vmatpush1.bf16.msra.mxu0 0
    %558 = vmatprep.subr.bf16.mxu0 0
    %559 = vmatpush1.bf16.msra.mxu0 0
    %560 = vmatprep.subr.bf16.mxu0 0
    %561 = vmatpush1.bf16.msra.mxu0 0
    %562 = vmatprep.subr.bf16.mxu0 0
    %563 = vmatpush1.bf16.msra.mxu0 0
    %564 = vmatprep.subr.bf16.mxu0 0
    %565 = vmatpush1.bf16.msra.mxu0 0
    %566 = vmatprep.subr.bf16.mxu0 0
    %567 = vmatpush1.bf16.msra.mxu0 0
    %568 = vmatprep.subr.bf16.mxu0 0
    %569 = vmatpush1.bf16.msra.mxu0 0
    %570 = vmatprep.subr.bf16.mxu0 0
    %571 = vmatpush1.bf16.msra.mxu0 0
    %572 = vmatprep.subr.bf16.mxu0 0
    %573 = vmatpush1.bf16.msra.mxu0 0
    %574 = vmatprep.subr.bf16.mxu0 0
    %575 = vmatpush1.bf16.msra.mxu0 0
    %576 = vmatprep.subr.bf16.mxu0 0
    %577 = vmatpush1.bf16.msra.mxu0 0
    %578 = vmatprep.subr.bf16.mxu0 0
    %579 = vmatpush1.bf16.msra.mxu0 0
    %580 = vmatprep.subr.bf16.mxu0 0
    %581 = vmatpush1.bf16.msra.mxu0 0
    %582 = vmatprep.subr.bf16.mxu0 0
    %583 = vmatpush1.bf16.msra.mxu0 0
    %584 = vmatprep.mubr.bf16.mxu0 0
    %585 = vmatmul.mubr.bf16.gmra.mrb[0].mxu0 %v526
    %v586 = vpop.f32.mrb[0].mxu0
    %v587 = vadd.f32 0.0, %v586
    %v588 = vpop.f32.mrb[0].mxu0
    %v589 = vpop.f32.mrb[0].mxu0
    %v590 = vadd.f32 0.0, %v589
    %v591 = vpop.f32.mrb[0].mxu0
    %592 = vmatprep.mubr.bf16.mxu0 0
    %593 = vmatmul.mubr.bf16.gmra.mrb[0].mxu0 %v529
    %v594 = vpop.f32.mrb[0].mxu0
    %v595 = vadd.f32 0.0, %v594
    %v596 = vpop.f32.mrb[0].mxu0
    %v597 = vpop.f32.mrb[0].mxu0
    %v598 = vadd.f32 0.0, %v597
    %v599 = vpop.f32.mrb[0].mxu0
    %600 = vmatprep.mubr.bf16.mxu0 0
    %601 = vmatmul.mubr.bf16.gmra.mrb[0].mxu0 %v532
    %v602 = vpop.f32.mrb[0].mxu0
    %v603 = vadd.f32 0.0, %v602
    %v604 = vpop.f32.mrb[0].mxu0
    %v605 = vpop.f32.mrb[0].mxu0
    %v606 = vadd.f32 0.0, %v605
    %v607 = vpop.f32.mrb[0].mxu0
    %608 = vmatprep.mubr.bf16.mxu0 0
    %609 = vmatmul.mubr.bf16.gmra.mrb[0].mxu0 %v535
    %v610 = vpop.f32.mrb[0].mxu0
    %v611 = vadd.f32 0.0, %v610
    %v612 = vpop.f32.mrb[0].mxu0
    %v613 = vpop.f32.mrb[0].mxu0
    %v614 = vadd.f32 0.0, %v613
    %v615 = vpop.f32.mrb[0].mxu0
    %616 = vmatprep.mubr.bf16.mxu0 0
    %617 = vmatmul.mubr.bf16.gmra.mrb[0].mxu0 %v538
    %v618 = vpop.f32.mrb[0].mxu0
    %v619 = vadd.f32 0.0, %v618
    %v620 = vpop.f32.mrb[0].mxu0
    %v621 = vpop.f32.mrb[0].mxu0
    %v622 = vadd.f32 0.0, %v621
    %v623 = vpop.f32.mrb[0].mxu0
    %624 = vmatprep.mubr.bf16.mxu0 0
    %625 = vmatmul.mubr.bf16.gmra.mrb[0].mxu0 %v541
    %v626 = vpop.f32.mrb[0].mxu0
    %v627 = vadd.f32 0.0, %v626
    %v628 = vpop.f32.mrb[0].mxu0
    %v629 = vpop.f32.mrb[0].mxu0
    %v630 = vadd.f32 0.0, %v629
    %v631 = vpop.f32.mrb[0].mxu0
    %632 = vmatprep.mubr.bf16.mxu0 0
    %633 = vmatmul.mubr.bf16.gmra.mrb[0].mxu0 %v544
    %v634 = vpop.f32.mrb[0].mxu0
    %v635 = vadd.f32 0.0, %v634
    %v636 = vpop.f32.mrb[0].mxu0
    %v637 = vpop.f32.mrb[0].mxu0
    %v638 = vadd.f32 0.0, %v637
    %v639 = vpop.f32.mrb[0].mxu0
    %640 = vmatprep.mubr.bf16.mxu0 0
    %641 = vmatmul.mubr.bf16.gmra.mrb[0].mxu0 %v547
    %v642 = vpop.f32.mrb[0].mxu0
    %v643 = vadd.f32 0.0, %v642
    %v644 = vpop.f32.mrb[0].mxu0
    %v645 = vpop.f32.mrb[0].mxu0
    %v646 = vadd.f32 0.0, %v645
    %v647 = vpop.f32.mrb[0].mxu0
    %648 = vdwg.mxu0
    %v649 = vld [vmem:[#allocation2] sm:$0xff]
    %v650 = vld [vmem:[#allocation2 + $0x8] sm:$0xff]
    %v651 = vld [vmem:[#allocation2 + $0x10] sm:$0xff]
    %v652 = vld [vmem:[#allocation2 + $0x18] sm:$0xff]
    %v653 = vld [vmem:[#allocation2 + $0x20] sm:$0xff]
    %v654 = vld [vmem:[#allocation2 + $0x28] sm:$0xff]
    %v655 = vld [vmem:[#allocation2 + $0x30] sm:$0xff]
    %v656 = vld [vmem:[#allocation2 + $0x38] sm:$0xff]
    %v657 = vld [vmem:[#allocation2 + $0x40] sm:$0xff]
    %v658 = vld [vmem:[#allocation2 + $0x48] sm:$0xff]
    %v659 = vld [vmem:[#allocation2 + $0x50] sm:$0xff]
    %v660 = vld [vmem:[#allocation2 + $0x58] sm:$0xff]
    %v661 = vld [vmem:[#allocation2 + $0x60] sm:$0xff]
    %v662 = vld [vmem:[#allocation2 + $0x68] sm:$0xff]
    %v663 = vld [vmem:[#allocation2 + $0x70] sm:$0xff]
    %v664 = vld [vmem:[#allocation2 + $0x78] sm:$0xff]
    %v665 = vadd.f32 %v649, %v587
    %v666 = vadd.f32 %v650, %v590
    %v667 = vadd.f32 %v651, %v595
    %v668 = vadd.f32 %v652, %v598
    %v669 = vadd.f32 %v653, %v603
    %v670 = vadd.f32 %v654, %v606
    %v671 = vadd.f32 %v655, %v611
    %v672 = vadd.f32 %v656, %v614
    %v673 = vadd.f32 %v657, %v619
    %v674 = vadd.f32 %v658, %v622
    %v675 = vadd.f32 %v659, %v627
    %v676 = vadd.f32 %v660, %v630
    %v677 = vadd.f32 %v661, %v635
    %v678 = vadd.f32 %v662, %v638
    %v679 = vadd.f32 %v663, %v643
    %v680 = vadd.f32 %v664, %v646
    %681 = vst [vmem:[#allocation2] sm:$0xff] %v665
    %682 = vst [vmem:[#allocation2 + $0x8] sm:$0xff] %v666
    %683 = vst [vmem:[#allocation2 + $0x10] sm:$0xff] %v667
    %684 = vst [vmem:[#allocation2 + $0x18] sm:$0xff] %v668
    %685 = vst [vmem:[#allocation2 + $0x20] sm:$0xff] %v669
    %686 = vst [vmem:[#allocation2 + $0x28] sm:$0xff] %v670
    %687 = vst [vmem:[#allocation2 + $0x30] sm:$0xff] %v671
    %688 = vst [vmem:[#allocation2 + $0x38] sm:$0xff] %v672
    %689 = vst [vmem:[#allocation2 + $0x40] sm:$0xff] %v673
    %690 = vst [vmem:[#allocation2 + $0x48] sm:$0xff] %v674
    %691 = vst [vmem:[#allocation2 + $0x50] sm:$0xff] %v675
    %692 = vst [vmem:[#allocation2 + $0x58] sm:$0xff] %v676
    %693 = vst [vmem:[#allocation2 + $0x60] sm:$0xff] %v677
    %694 = vst [vmem:[#allocation2 + $0x68] sm:$0xff] %v678
    %695 = vst [vmem:[#allocation2 + $0x70] sm:$0xff] %v679
    %696 = vst [vmem:[#allocation2 + $0x78] sm:$0xff] %v680
    %v697 = vld [vmem:[#allocation2] sm:$0xff]
    %v698 = vld [vmem:[#allocation2 + $0x8] sm:$0xff]
    %v699 = vld [vmem:[#allocation2 + $0x10] sm:$0xff]
    %v700 = vld [vmem:[#allocation2 + $0x18] sm:$0xff]
    %v701 = vld [vmem:[#allocation2 + $0x20] sm:$0xff]
    %v702 = vld [vmem:[#allocation2 + $0x28] sm:$0xff]
    %v703 = vld [vmem:[#allocation2 + $0x30] sm:$0xff]
    %v704 = vld [vmem:[#allocation2 + $0x38] sm:$0xff]
    %v705 = vpack.c.bf16 %v698, %v697
    %v706 = vpack.c.bf16 %v700, %v699
    %v707 = vpack.c.bf16 %v702, %v701
    %v708 = vpack.c.bf16 %v704, %v703
    %v713 = vunpack.c.l.b16 %v705
    %v714 = vunpack.c.h.b16 %v705
    %v715 = vunpack.c.l.b16 %v706
    %v716 = vunpack.c.h.b16 %v706
    %v717 = vunpack.c.l.b16 %v707
    %v718 = vunpack.c.h.b16 %v707
    %v719 = vunpack.c.l.b16 %v708
    %v720 = vunpack.c.h.b16 %v708
    %v721 = vpack.c.b16 %v713, %v713
    %v722 = vpack.c.b16 %v714, %v714
    %v723 = vpack.c.b16 %v715, %v715
    %v724 = vpack.c.b16 %v716, %v716
    %v725 = vpack.c.b16 %v717, %v717
    %v726 = vpack.c.b16 %v718, %v718
    %v727 = vpack.c.b16 %v719, %v719
    %v728 = vpack.c.b16 %v720, %v720
    %737 = vst [vmem:[#allocation3] sm:$0xf] %v721
    %738 = vst [vmem:[#allocation3 + $0x4] sm:$0xf] %v722
    %739 = vst [vmem:[#allocation3 + $0x8] sm:$0xf] %v723
    %740 = vst [vmem:[#allocation3 + $0xc] sm:$0xf] %v724
    %741 = vst [vmem:[#allocation3 + $0x10] sm:$0xf] %v725
    %742 = vst [vmem:[#allocation3 + $0x14] sm:$0xf] %v726
    %743 = vst [vmem:[#allocation3 + $0x18] sm:$0xf] %v727
    %744 = vst [vmem:[#allocation3 + $0x1c] sm:$0xf] %v728
    %v745 = vadd.f32 %v697, %v698
    %v746 = vadd.f32 %v745, %v699
    %v747 = vadd.f32 %v746, %v700
    %v748 = vadd.f32 %v747, %v701
    %v749 = vadd.f32 %v748, %v702
    %v750 = vadd.f32 %v749, %v703
    %v751 = vadd.f32 %v750, %v704
    %v752 = vrot.slane %v751, 4
    %v753 = vadd.f32 %v751, %v752
    %v754 = vrot.slane %v753, 2
    %v755 = vadd.f32 %v753, %v754
    %v756 = vrot.slane %v755, 1
    %v757 = vadd.f32 %v755, %v756
    %v758 = vadd.f32 %v757, 0.0
    %v759 = vmul.f32 %v697, %v697
    %v760 = vmul.f32 %v698, %v698
    %v761 = vmul.f32 %v699, %v699
    %v762 = vmul.f32 %v700, %v700
    %v763 = vmul.f32 %v701, %v701
    %v764 = vmul.f32 %v702, %v702
    %v765 = vmul.f32 %v703, %v703
    %v766 = vmul.f32 %v704, %v704
    %v767 = vadd.f32 %v759, %v760
    %v768 = vadd.f32 %v767, %v761
    %v769 = vadd.f32 %v768, %v762
    %v770 = vadd.f32 %v769, %v763
    %v771 = vadd.f32 %v770, %v764
    %v772 = vadd.f32 %v771, %v765
    %v773 = vadd.f32 %v772, %v766
    %v774 = vrot.slane %v773, 4
    %v775 = vadd.f32 %v773, %v774
    %v776 = vrot.slane %v775, 2
    %v777 = vadd.f32 %v775, %v776
    %v778 = vrot.slane %v777, 1
    %v779 = vadd.f32 %v777, %v778
    %v780 = vadd.f32 %v779, 0.0
    %v781 = vld [vmem:[#allocation2 + $0x40] sm:$0xff]
    %v782 = vld [vmem:[#allocation2 + $0x48] sm:$0xff]
    %v783 = vld [vmem:[#allocation2 + $0x50] sm:$0xff]
    %v784 = vld [vmem:[#allocation2 + $0x58] sm:$0xff]
    %v785 = vld [vmem:[#allocation2 + $0x60] sm:$0xff]
    %v786 = vld [vmem:[#allocation2 + $0x68] sm:$0xff]
    %v787 = vld [vmem:[#allocation2 + $0x70] sm:$0xff]
    %v788 = vld [vmem:[#allocation2 + $0x78] sm:$0xff]
    %v789 = vpack.c.bf16 %v782, %v781
    %v790 = vpack.c.bf16 %v784, %v783
    %v791 = vpack.c.bf16 %v786, %v785
    %v792 = vpack.c.bf16 %v788, %v787
    %v797 = vunpack.c.l.b16 %v789
    %v798 = vunpack.c.h.b16 %v789
    %v799 = vunpack.c.l.b16 %v790
    %v800 = vunpack.c.h.b16 %v790
    %v801 = vunpack.c.l.b16 %v791
    %v802 = vunpack.c.h.b16 %v791
    %v803 = vunpack.c.l.b16 %v792
    %v804 = vunpack.c.h.b16 %v792
    %v805 = vpack.c.b16 %v797, %v797
    %v806 = vpack.c.b16 %v798, %v798
    %v807 = vpack.c.b16 %v799, %v799
    %v808 = vpack.c.b16 %v800, %v800
    %v809 = vpack.c.b16 %v801, %v801
    %v810 = vpack.c.b16 %v802, %v802
    %v811 = vpack.c.b16 %v803, %v803
    %v812 = vpack.c.b16 %v804, %v804
    %821 = vst [vmem:[#allocation3 + $0x20] sm:$0xf] %v805
    %822 = vst [vmem:[#allocation3 + $0x24] sm:$0xf] %v806
    %823 = vst [vmem:[#allocation3 + $0x28] sm:$0xf] %v807
    %824 = vst [vmem:[#allocation3 + $0x2c] sm:$0xf] %v808
    %825 = vst [vmem:[#allocation3 + $0x30] sm:$0xf] %v809
    %826 = vst [vmem:[#allocation3 + $0x34] sm:$0xf] %v810
    %827 = vst [vmem:[#allocation3 + $0x38] sm:$0xf] %v811
    %828 = vst [vmem:[#allocation3 + $0x3c] sm:$0xf] %v812
    %v829 = vadd.f32 %v781, %v782
    %v830 = vadd.f32 %v829, %v783
    %v831 = vadd.f32 %v830, %v784
    %v832 = vadd.f32 %v831, %v785
    %v833 = vadd.f32 %v832, %v786
    %v834 = vadd.f32 %v833, %v787
    %v835 = vadd.f32 %v834, %v788
    %v836 = vrot.slane %v835, 4
    %v837 = vadd.f32 %v835, %v836
    %v838 = vrot.slane %v837, 2
    %v839 = vadd.f32 %v837, %v838
    %v840 = vrot.slane %v839, 1
    %v841 = vadd.f32 %v839, %v840
    %v842 = vadd.f32 %v758, %v841
    %v843 = vmul.f32 %v781, %v781
    %v844 = vmul.f32 %v782, %v782
    %v845 = vmul.f32 %v783, %v783
    %v846 = vmul.f32 %v784, %v784
    %v847 = vmul.f32 %v785, %v785
    %v848 = vmul.f32 %v786, %v786
    %v849 = vmul.f32 %v787, %v787
    %v850 = vmul.f32 %v788, %v788
    %v851 = vadd.f32 %v843, %v844
    %v852 = vadd.f32 %v851, %v845
    %v853 = vadd.f32 %v852, %v846
    %v854 = vadd.f32 %v853, %v847
    %v855 = vadd.f32 %v854, %v848
    %v856 = vadd.f32 %v855, %v849
    %v857 = vadd.f32 %v856, %v850
    %v858 = vrot.slane %v857, 4
    %v859 = vadd.f32 %v857, %v858
    %v860 = vrot.slane %v859, 2
    %v861 = vadd.f32 %v859, %v860
    %v862 = vrot.slane %v861, 1
    %v863 = vadd.f32 %v861, %v862
    %v864 = vadd.f32 %v780, %v863
    %865 = vst [vmem:[#allocation5] sm:$0xff] %v842
    %866 = vst [vmem:[#allocation7] sm:$0xff] %v864
    // Predicated region
    $region14: #{tpu_custom_call.1} parent=1 // pred_check
      _
    $region15: #{tpu_custom_call.1} parent=1 // pred_check_branch
      %868 = sbr.rel (0) target = $region17
    $region16: #{tpu_custom_call.1} parent=1 // pred_region
      %s870 = ssub.s32 1024, 1024
      %871 = vsyncadd [#allocation4], %s870
      %s872 = sshll.u32 [#allocation3], 4
      %s873 = int_to_ptr.vmem [resolvable:$true] %s872
      %878 = dma.vmem_to_hbm [thread:$0]  %s873, 1024, %s3, [#allocation4], 64, 64, 4
    $region17: #{tpu_custom_call.1} parent=1 // pred_fallthru
      _
    // Predicated region
    $region18: #{tpu_custom_call.1} parent=1 // pred_check
      _
    $region19: #{tpu_custom_call.1} parent=1 // pred_check_branch
      %880 = sbr.rel (0) target = $region21
    $region20: #{tpu_custom_call.1} parent=1 // pred_region
      %s882 = ssub.s32 128, 128
      %883 = vsyncadd [#allocation6], %s882
      %s885 = sshll.u32 [#allocation5], 4
      %s886 = int_to_ptr.vmem [resolvable:$true] %s885
      %888 = dma.vmem_to_hbm [thread:$0]  %s886, 128, %s4, [#allocation6]
    $region21: #{tpu_custom_call.1} parent=1 // pred_fallthru
      _
    // Predicated region
    $region22: #{tpu_custom_call.1} parent=1 // pred_check
      _
    $region23: #{tpu_custom_call.1} parent=1 // pred_check_branch
      %890 = sbr.rel (0) target = $region25
    $region24: #{tpu_custom_call.1} parent=1 // pred_region
      %s892 = ssub.s32 128, 128
      %893 = vsyncadd [#allocation6], %s892
      %s895 = sshll.u32 [#allocation7], 4
      %s896 = int_to_ptr.vmem [resolvable:$true] %s895
      %898 = dma.vmem_to_hbm [thread:$0]  %s896, 128, %s5, [#allocation6]
    $region25: #{tpu_custom_call.1} parent=1 // pred_fallthru
      _
    // Predicated region
    $region26: #{tpu_custom_call.1} parent=1 // pred_check
      _
    $region27: #{tpu_custom_call.1} parent=1 // pred_check_branch
      %900 = sbr.rel (0) target = $region29
    $region28: #{tpu_custom_call.1} parent=1 // pred_region
      %901 = dma.done [#allocation4], 1024
    $region29: #{tpu_custom_call.1} parent=1 // pred_fallthru
      _
    // Predicated region
    $region30: #{tpu_custom_call.1} parent=1 // pred_check
      _
    $region31: #{tpu_custom_call.1} parent=1 // pred_check_branch
      %903 = sbr.rel (0) target = $region33
    $region32: #{tpu_custom_call.1} parent=1 // pred_region
      %904 = dma.done [#allocation6], 128
    $region33: #{tpu_custom_call.1} parent=1 // pred_fallthru
      _
    // Predicated region
    $region34: #{tpu_custom_call.1} parent=1 // pred_check
      _
    $region35: #{tpu_custom_call.1} parent=1 // pred_check_branch
      %906 = sbr.rel (0) target = $region37
    $region36: #{tpu_custom_call.1} parent=1 // pred_region
      %907 = dma.done [#allocation6], 128
    $region37: #{tpu_custom_call.1} parent=1 // pred_fallthru
      _
    %908 = vsyncpa [#allocation4], 1
    %909 = vsyncpa [#allocation6], 1

</llo_original>
